<compile_context>
chip_gen: v7x
topology: tpu7x:2x2x1
jax: 0.10.0
libtpu: 0.0.40
codegen_flags: <defaults>
</compile_context>

<pallas_src>
import functools

import jax
import jax.numpy as jnp
from jax import lax
from jax.experimental import pallas as pl
from jax.experimental.pallas import tpu as pltpu

_LN_EPS = 1e-5  # PyTorch nn.LayerNorm default


def _layernorm(h, gamma, beta, inv_d):
    # h: (TM, D) f32. Row reductions go to the XLU slot, rsqrt to the EUP slot.
    mu = jnp.sum(h, axis=-1, keepdims=True) * inv_d
    d = h - mu
    var = jnp.sum(d * d, axis=-1, keepdims=True) * inv_d
    return d * lax.rsqrt(var + _LN_EPS) * gamma + beta


def _residual_kernel(x_ref, w1_ref, w2_ref, p_ref, o_ref, *, inv_d):
    x = x_ref[...]                              # (TM, D), input dtype (bf16 or f32)
    xf = x.astype(jnp.float32)

    p = p_ref[...]                              # (8, D) f32: b1,g1,be1,b2,g2,be2,pad,pad
    b1, g1, be1 = p[0:1], p[1:2], p[2:3]
    b2, g2, be2 = p[3:4], p[4:5], p[5:6]

    # Linear 1 (MXU, bf16 operands, f32 accumulation) + LayerNorm 1 + ReLU
    h = jnp.dot(x.astype(jnp.bfloat16), w1_ref[...],
                preferred_element_type=jnp.float32) + b1
    h = jnp.maximum(_layernorm(h, g1, be1, inv_d), 0.0)

    # Dropout(0.1): identity at inference.
    # TODO(synk): training-mode dropout would use pltpu.prng_seed / prng_random_bits.

    # Linear 2 (MXU) + LayerNorm 2
    h = jnp.dot(h.astype(jnp.bfloat16), w2_ref[...],
                preferred_element_type=jnp.float32) + b2
    h = _layernorm(h, g2, be2, inv_d)

    # Residual add + final ReLU, store in the I/O dtype.
    o_ref[...] = jnp.maximum(xf + h, 0.0).astype(o_ref.dtype)


def _round_up(x, m):
    return (x + m - 1) // m * m


def residual_forward(x, w1, b1, g1, be1, w2, b2, g2, be2, *, tm=512):
    """x: (N, D). Weights are (D_in, D_out); biases/LN params are (D,).

    Output has the same dtype as x (use bf16 x for minimum HBM traffic).
    """
    N, D = x.shape
    f32 = jnp.float32

    # One-time (cold-path) parameter prep: bf16 weights, packed (8, D) vector params.
    w1b = w1.astype(jnp.bfloat16)
    w2b = w2.astype(jnp.bfloat16)
    zero = jnp.zeros((D,), f32)
    params = jnp.stack([b1, g1, be1, b2, g2, be2, zero, zero]).astype(f32)  # (8, D)

    # Row tile: as large as possible (amortize per-step overhead), clamped to batch.
    tm_eff = max(8, min(tm, _round_up(N, 8)))
    n_pad = _round_up(N, tm_eff)
    x_in = x if n_pad == N else jnp.pad(x, ((0, n_pad - N), (0, 0)))

    row_spec = pl.BlockSpec((tm_eff, D), lambda i: (i, 0))
    mat_spec = pl.BlockSpec((D, D), lambda i: (0, 0))     # resident across the grid
    prm_spec = pl.BlockSpec((8, D), lambda i: (0, 0))     # resident across the grid

    itemsize = jnp.dtype(x.dtype).itemsize
    cost = pl.CostEstimate(
        flops=4 * N * D * D,                              # two (N,D)x(D,D) matmuls
        transcendentals=2 * N,                            # two rsqrt per row
        bytes_accessed=2 * N * D * itemsize + 2 * D * D * 2 + 8 * D * 4,
    )

    # Raise the scoped-VMEM limit only if the double-buffered row tiles need it
    # (relevant on v5e's 16 MiB default when tm is pushed very large in f32).
    buf_bytes = 2 * 2 * tm_eff * D * itemsize + 2 * 2 * D * D + 8 * D * 4
    cp_kwargs = dict(dimension_semantics=("parallel",))
    if buf_bytes > (12 << 20):
        cp_kwargs["vmem_limit_bytes"] = min(2 * buf_bytes + (4 << 20), 100 << 20)

    out = pl.pallas_call(
        functools.partial(_residual_kernel, inv_d=1.0 / D),
        out_shape=jax.ShapeDtypeStruct((n_pad, D), x.dtype),
        grid=(n_pad // tm_eff,),
        in_specs=[row_spec, mat_spec, mat_spec, prm_spec],
        out_specs=row_spec,
        compiler_params=pltpu.CompilerParams(**cp_kwargs),
        cost_estimate=cost,
    )(x_in, w1b, w2b, params)

    return out if n_pad == N else out[:N]


def _reference(x, w1, b1, g1, be1, w2, b2, g2, be2):
    """Pure-JAX (f32) mirror of the PyTorch module in eval mode."""
    def ln(h, g, b):
        mu = h.mean(-1, keepdims=True)
        var = ((h - mu) ** 2).mean(-1, keepdims=True)
        return (h - mu) / jnp.sqrt(var + _LN_EPS) * g + b

    h = x @ w1 + b1
    h = jnp.maximum(ln(h, g1, be1), 0.0)
    h = h @ w2 + b2
    h = ln(h, g2, be2)
    return jnp.maximum(x + h, 0.0)


if __name__ == "__main__":
    key = jax.random.PRNGKey(0)
    ks = jax.random.split(key, 9)

    N, D = 32, 128
    scale = 1.0 / jnp.sqrt(jnp.float32(D))

    # bf16 activations in / out (half the HBM traffic); parameters generated in f32.
    x   = jax.random.normal(ks[0], (N, D), jnp.float32).astype(jnp.bfloat16)
    w1  = jax.random.normal(ks[1], (D, D), jnp.float32) * scale
    b1  = jax.random.normal(ks[2], (D,),   jnp.float32) * 0.1
    g1  = 1.0 + 0.1 * jax.random.normal(ks[3], (D,), jnp.float32)
    be1 = 0.1 * jax.random.normal(ks[4], (D,), jnp.float32)
    w2  = jax.random.normal(ks[5], (D, D), jnp.float32) * scale
    b2  = jax.random.normal(ks[6], (D,),   jnp.float32) * 0.1
    g2  = 1.0 + 0.1 * jax.random.normal(ks[7], (D,), jnp.float32)
    be2 = 0.1 * jax.random.normal(ks[8], (D,), jnp.float32)

    out = jax.block_until_ready(
        residual_forward(x, w1, b1, g1, be1, w2, b2, g2, be2, tm=512))

    # Reference in f32, using the same bf16-rounded weights/input the kernel feeds the MXU.
    ref = jax.block_until_ready(
        _reference(x.astype(jnp.float32),
                   w1.astype(jnp.bfloat16).astype(jnp.float32), b1, g1, be1,
                   w2.astype(jnp.bfloat16).astype(jnp.float32), b2, g2, be2))

    assert out.shape == (N, D) and out.dtype == x.dtype
    err = float(jnp.max(jnp.abs(out.astype(jnp.float32) - ref)))
    assert err < 1e-1, err  # bf16 I/O tolerance
    print("KERNEL_OK")
</pallas_src>

<mosaic_0001>
module attributes {stable_mosaic.version = 11 : i64} {
  func.func @_residual_kernel(%arg0: i32, %arg1: memref<32x128xbf16, #tpu.memory_space<vmem>>, %arg2: memref<128x128xbf16, #tpu.memory_space<vmem>>, %arg3: memref<128x128xbf16, #tpu.memory_space<vmem>>, %arg4: memref<8x128xf32, #tpu.memory_space<vmem>>, %arg5: memref<32x128xbf16, #tpu.memory_space<vmem>>) attributes {dimension_semantics = [#tpu.dimension_semantics<parallel>], iteration_bounds = array<i64: 1>, scalar_prefetch = 0 : i64, scratch_operands = 0 : i64, tpu.core_type = #tpu.core_type<tc>, window_params = [{transform_indices = @transform_0, window_bounds = array<i64: 32, 128>}, {pipeline_mode = #tpu.pipeline_mode<synchronous>, transform_indices = @transform_1, window_bounds = array<i64: 128, 128>}, {pipeline_mode = #tpu.pipeline_mode<synchronous>, transform_indices = @transform_2, window_bounds = array<i64: 128, 128>}, {pipeline_mode = #tpu.pipeline_mode<synchronous>, transform_indices = @transform_3, window_bounds = array<i64: 8, 128>}, {transform_indices = @transform_4, window_bounds = array<i64: 32, 128>}]} {
    %c0 = arith.constant 0 : index
    %c0_0 = arith.constant 0 : index
    %0 = vector.load %arg1[%c0, %c0_0] : memref<32x128xbf16, #tpu.memory_space<vmem>>, vector<32x128xbf16>
    %1 = arith.extf %0 : vector<32x128xbf16> to vector<32x128xf32>
    %c0_1 = arith.constant 0 : index
    %c0_2 = arith.constant 0 : index
    %2 = vector.load %arg4[%c0_1, %c0_2] : memref<8x128xf32, #tpu.memory_space<vmem>>, vector<8x128xf32>
    %3 = vector.extract_strided_slice %2 {offsets = [0, 0], sizes = [1, 128], strides = [1, 1]} : vector<8x128xf32> to vector<1x128xf32>
    %4 = vector.extract_strided_slice %2 {offsets = [1, 0], sizes = [1, 128], strides = [1, 1]} : vector<8x128xf32> to vector<1x128xf32>
    %5 = vector.extract_strided_slice %2 {offsets = [2, 0], sizes = [1, 128], strides = [1, 1]} : vector<8x128xf32> to vector<1x128xf32>
    %6 = vector.extract_strided_slice %2 {offsets = [3, 0], sizes = [1, 128], strides = [1, 1]} : vector<8x128xf32> to vector<1x128xf32>
    %7 = vector.extract_strided_slice %2 {offsets = [4, 0], sizes = [1, 128], strides = [1, 1]} : vector<8x128xf32> to vector<1x128xf32>
    %8 = vector.extract_strided_slice %2 {offsets = [5, 0], sizes = [1, 128], strides = [1, 1]} : vector<8x128xf32> to vector<1x128xf32>
    %c0_3 = arith.constant 0 : index
    %c0_4 = arith.constant 0 : index
    %9 = vector.load %arg2[%c0_3, %c0_4] : memref<128x128xbf16, #tpu.memory_space<vmem>>, vector<128x128xbf16>
    %cst = arith.constant dense<0.000000e+00> : vector<32x128xf32>
    %10 = tpu.matmul %0, %9, %cst {dimension_numbers = #tpu.dot_dimension_numbers<[1], [0], [0], [1], [0, 0, 1, 1], [], []>} : vector<32x128xbf16>, vector<128x128xbf16>, vector<32x128xf32> -> vector<32x128xf32>
    %11 = vector.broadcast %3 : vector<1x128xf32> to vector<32x128xf32>
    %12 = arith.addf %10, %11 : vector<32x128xf32>
    %cst_5 = arith.constant dense<0.000000e+00> : vector<32xf32>
    %13 = vector.multi_reduction <add>, %12, %cst_5 [1] : vector<32x128xf32> to vector<32xf32>
    %14 = vector.shape_cast %13 : vector<32xf32> to vector<32x1xf32>
    %cst_6 = arith.constant 7.812500e-03 : f32
    %15 = vector.broadcast %cst_6 : f32 to vector<32x1xf32>
    %16 = arith.mulf %14, %15 : vector<32x1xf32>
    %17 = vector.broadcast %16 : vector<32x1xf32> to vector<32x128xf32>
    %18 = arith.subf %12, %17 : vector<32x128xf32>
    %19 = arith.mulf %18, %18 : vector<32x128xf32>
    %cst_7 = arith.constant dense<0.000000e+00> : vector<32xf32>
    %20 = vector.multi_reduction <add>, %19, %cst_7 [1] : vector<32x128xf32> to vector<32xf32>
    %21 = vector.shape_cast %20 : vector<32xf32> to vector<32x1xf32>
    %cst_8 = arith.constant 7.812500e-03 : f32
    %22 = vector.broadcast %cst_8 : f32 to vector<32x1xf32>
    %23 = arith.mulf %21, %22 : vector<32x1xf32>
    %cst_9 = arith.constant 9.99999974E-6 : f32
    %24 = vector.broadcast %cst_9 : f32 to vector<32x1xf32>
    %25 = arith.addf %23, %24 : vector<32x1xf32>
    %26 = math.rsqrt %25 : vector<32x1xf32>
    %27 = vector.broadcast %26 : vector<32x1xf32> to vector<32x128xf32>
    %28 = arith.mulf %18, %27 : vector<32x128xf32>
    %29 = vector.broadcast %4 : vector<1x128xf32> to vector<32x128xf32>
    %30 = arith.mulf %28, %29 : vector<32x128xf32>
    %31 = vector.broadcast %5 : vector<1x128xf32> to vector<32x128xf32>
    %32 = arith.addf %30, %31 : vector<32x128xf32>
    %cst_10 = arith.constant 0.000000e+00 : f32
    %33 = vector.broadcast %cst_10 : f32 to vector<32x128xf32>
    %34 = arith.maximumf %32, %33 : vector<32x128xf32>
    %35 = arith.truncf %34 : vector<32x128xf32> to vector<32x128xbf16>
    %c0_11 = arith.constant 0 : index
    %c0_12 = arith.constant 0 : index
    %36 = vector.load %arg3[%c0_11, %c0_12] : memref<128x128xbf16, #tpu.memory_space<vmem>>, vector<128x128xbf16>
    %cst_13 = arith.constant dense<0.000000e+00> : vector<32x128xf32>
    %37 = tpu.matmul %35, %36, %cst_13 {dimension_numbers = #tpu.dot_dimension_numbers<[1], [0], [0], [1], [0, 0, 1, 1], [], []>} : vector<32x128xbf16>, vector<128x128xbf16>, vector<32x128xf32> -> vector<32x128xf32>
    %38 = vector.broadcast %6 : vector<1x128xf32> to vector<32x128xf32>
    %39 = arith.addf %37, %38 : vector<32x128xf32>
    %cst_14 = arith.constant dense<0.000000e+00> : vector<32xf32>
    %40 = vector.multi_reduction <add>, %39, %cst_14 [1] : vector<32x128xf32> to vector<32xf32>
    %41 = vector.shape_cast %40 : vector<32xf32> to vector<32x1xf32>
    %cst_15 = arith.constant 7.812500e-03 : f32
    %42 = vector.broadcast %cst_15 : f32 to vector<32x1xf32>
    %43 = arith.mulf %41, %42 : vector<32x1xf32>
    %44 = vector.broadcast %43 : vector<32x1xf32> to vector<32x128xf32>
    %45 = arith.subf %39, %44 : vector<32x128xf32>
    %46 = arith.mulf %45, %45 : vector<32x128xf32>
    %cst_16 = arith.constant dense<0.000000e+00> : vector<32xf32>
    %47 = vector.multi_reduction <add>, %46, %cst_16 [1] : vector<32x128xf32> to vector<32xf32>
    %48 = vector.shape_cast %47 : vector<32xf32> to vector<32x1xf32>
    %cst_17 = arith.constant 7.812500e-03 : f32
    %49 = vector.broadcast %cst_17 : f32 to vector<32x1xf32>
    %50 = arith.mulf %48, %49 : vector<32x1xf32>
    %cst_18 = arith.constant 9.99999974E-6 : f32
    %51 = vector.broadcast %cst_18 : f32 to vector<32x1xf32>
    %52 = arith.addf %50, %51 : vector<32x1xf32>
    %53 = math.rsqrt %52 : vector<32x1xf32>
    %54 = vector.broadcast %53 : vector<32x1xf32> to vector<32x128xf32>
    %55 = arith.mulf %45, %54 : vector<32x128xf32>
    %56 = vector.broadcast %7 : vector<1x128xf32> to vector<32x128xf32>
    %57 = arith.mulf %55, %56 : vector<32x128xf32>
    %58 = vector.broadcast %8 : vector<1x128xf32> to vector<32x128xf32>
    %59 = arith.addf %57, %58 : vector<32x128xf32>
    %60 = arith.addf %1, %59 : vector<32x128xf32>
    %cst_19 = arith.constant 0.000000e+00 : f32
    %61 = vector.broadcast %cst_19 : f32 to vector<32x128xf32>
    %62 = arith.maximumf %60, %61 : vector<32x128xf32>
    %63 = arith.truncf %62 : vector<32x128xf32> to vector<32x128xbf16>
    %c0_20 = arith.constant 0 : index
    %c0_21 = arith.constant 0 : index
    %64 = vector.load %arg5[%c0_20, %c0_21] : memref<32x128xbf16, #tpu.memory_space<vmem>>, vector<32x128xbf16>
    tpu.vector_store %arg5[%c0_20, %c0_21], %63 {strides = array<i32>} : memref<32x128xbf16, #tpu.memory_space<vmem>>, vector<32x128xbf16>,
    return
  }
  func.func @transform_0(%arg0: i32) -> (i32, i32) {
    %c0_i32 = arith.constant 0 : i32
    %c0_i32_0 = arith.constant 0 : i32
    return %arg0, %c0_i32 : i32, i32
  }
  func.func @transform_1(%arg0: i32) -> (i32, i32) {
    %c0_i32 = arith.constant 0 : i32
    %c0_i32_0 = arith.constant 0 : i32
    %c0_i32_1 = arith.constant 0 : i32
    return %c0_i32, %c0_i32_0 : i32, i32
  }
  func.func @transform_2(%arg0: i32) -> (i32, i32) {
    %c0_i32 = arith.constant 0 : i32
    %c0_i32_0 = arith.constant 0 : i32
    %c0_i32_1 = arith.constant 0 : i32
    return %c0_i32, %c0_i32_0 : i32, i32
  }
  func.func @transform_3(%arg0: i32) -> (i32, i32) {
    %c0_i32 = arith.constant 0 : i32
    %c0_i32_0 = arith.constant 0 : i32
    %c0_i32_1 = arith.constant 0 : i32
    return %c0_i32, %c0_i32_0 : i32, i32
  }
  func.func @transform_4(%arg0: i32) -> (i32, i32) {
    %c0_i32 = arith.constant 0 : i32
    %c0_i32_0 = arith.constant 0 : i32
    return %arg0, %c0_i32 : i32, i32
  }
}

</mosaic_0001>

<llo_original>
// kernel: tpu_custom_call.1
$region0: #{tpu_custom_call.1}
  #allocation0 [shape = 'u32[]', space=smem, size = 0x4, offset = 0x4, fixed_abs, tag = 'smem constant byte address 0x4 - core index']
  #allocation1 [shape = 'u32[144,128]{1,0:T(1,128)}', space=vmem, size = 0x12000, scoped, tag = 'internal scratch']
  %s0 = inlined_call_operand.hbm [shape: bf16[32,128], index: 0, kind: input, shape index: {}]
  %s1 = inlined_call_operand.hbm [shape: bf16[128,128], index: 1, kind: input, shape index: {}]
  %s2 = inlined_call_operand.hbm [shape: bf16[128,128], index: 2, kind: input, shape index: {}]
  %s3 = inlined_call_operand.vmem [shape: f32[8,128], index: 3, kind: input, shape index: {}]
  %s4 = inlined_call_operand.hbm [shape: bf16[32,128], index: 4, kind: output, shape index: {}]
  %s5 = sld [smem:[#allocation0]]
  $region38: #{tpu_custom_call.1} parent=0
    _
  %s7 = ssub.s32 1, %s5
  %s8 = scalar_select 0, %s7, %s5
  $region1: #{tpu_custom_call.1} parent=0
    #allocation2 [shape = 'u8[8192]{0}', space=vmem, size = 0x2000, scoped, tag = 'input window, operand 0, single buffered']
    #allocation3 [shape = 's32[1]{0}', space=sflag, size = 0x4, scoped, tag = 'scoped memory for tpu_custom_call.1']
    #allocation4 [shape = 's32[1]{0}', space=sflag, size = 0x4, scoped, tag = 'scoped memory for tpu_custom_call.1']
    #allocation5 [shape = 'u8[32768]{0}', space=vmem, size = 0x8000, scoped, tag = 'input window, operand 1, single buffered']
    #allocation6 [shape = 's32[1]{0}', space=sflag, size = 0x4, scoped, tag = 'scoped memory for tpu_custom_call.1']
    #allocation7 [shape = 'u8[32768]{0}', space=vmem, size = 0x8000, scoped, tag = 'input window, operand 2, single buffered']
    #allocation8 [shape = 'u8[8192]{0}', space=vmem, size = 0x2000, scoped, tag = 'output window, operand 0, single buffered']
    %9 = vsyncpa [#allocation3], 0
    %10 = vsyncpa [#allocation6], 0
    %11 = vsyncpa [#allocation4], 0
    // Predicated region
    $region2: #{tpu_custom_call.1} parent=1 // pred_check
      _
    $region3: #{tpu_custom_call.1} parent=1 // pred_check_branch
      %13 = sbr.rel (0) target = $region5
    $region4: #{tpu_custom_call.1} parent=1 // pred_region
      %s15 = ssub.s32 256, 256
      %16 = vsyncadd [#allocation3], %s15
      %s17 = sshll.u32 [#allocation2], 4
      %s18 = int_to_ptr.vmem [resolvable:$true] %s17
      %23 = dma.hbm_to_vmem [thread:$0]  %s0, 256, %s18, [#allocation3], 64, 64, 4
    $region5: #{tpu_custom_call.1} parent=1 // pred_fallthru
      _
    // Predicated region
    $region6: #{tpu_custom_call.1} parent=1 // pred_check
      _
    $region7: #{tpu_custom_call.1} parent=1 // pred_check_branch
      %25 = sbr.rel (0) target = $region9
    $region8: #{tpu_custom_call.1} parent=1 // pred_region
      %s27 = ssub.s32 1024, 1024
      %28 = vsyncadd [#allocation6], %s27
      %s29 = sshll.u32 [#allocation5], 4
      %s30 = int_to_ptr.vmem [resolvable:$true] %s29
      %35 = dma.hbm_to_vmem [thread:$0]  %s1, 1024, %s30, [#allocation6], 64, 64, 4
    $region9: #{tpu_custom_call.1} parent=1 // pred_fallthru
      _
    // Predicated region
    $region10: #{tpu_custom_call.1} parent=1 // pred_check
      _
    $region11: #{tpu_custom_call.1} parent=1 // pred_check_branch
      %37 = sbr.rel (0) target = $region13
    $region12: #{tpu_custom_call.1} parent=1 // pred_region
      %s39 = ssub.s32 1024, 1024
      %40 = vsyncadd [#allocation6], %s39
      %s41 = sshll.u32 [#allocation7], 4
      %s42 = int_to_ptr.vmem [resolvable:$true] %s41
      %47 = dma.hbm_to_vmem [thread:$0]  %s2, 1024, %s42, [#allocation6], 64, 64, 4
    $region13: #{tpu_custom_call.1} parent=1 // pred_fallthru
      _
    // Predicated region
    $region14: #{tpu_custom_call.1} parent=1 // pred_check
      _
    $region15: #{tpu_custom_call.1} parent=1 // pred_check_branch
      %49 = sbr.rel (0) target = $region17
    $region16: #{tpu_custom_call.1} parent=1 // pred_region
      _
    $region17: #{tpu_custom_call.1} parent=1 // pred_fallthru
      _
    // Predicated region
    $region18: #{tpu_custom_call.1} parent=1 // pred_check
      _
    $region19: #{tpu_custom_call.1} parent=1 // pred_check_branch
      %51 = sbr.rel (0) target = $region21
    $region20: #{tpu_custom_call.1} parent=1 // pred_region
      %52 = dma.done [#allocation3], 256
    $region21: #{tpu_custom_call.1} parent=1 // pred_fallthru
      _
    // Predicated region
    $region22: #{tpu_custom_call.1} parent=1 // pred_check
      _
    $region23: #{tpu_custom_call.1} parent=1 // pred_check_branch
      %54 = sbr.rel (0) target = $region25
    $region24: #{tpu_custom_call.1} parent=1 // pred_region
      %55 = dma.done [#allocation6], 1024
    $region25: #{tpu_custom_call.1} parent=1 // pred_fallthru
      _
    // Predicated region
    $region26: #{tpu_custom_call.1} parent=1 // pred_check
      _
    $region27: #{tpu_custom_call.1} parent=1 // pred_check_branch
      %57 = sbr.rel (0) target = $region29
    $region28: #{tpu_custom_call.1} parent=1 // pred_region
      %58 = dma.done [#allocation6], 1024
    $region29: #{tpu_custom_call.1} parent=1 // pred_fallthru
      _
    %v60 = vld [vmem:[#allocation2] sm:$0xf]
    %v61 = vld [vmem:[#allocation2 + $0x4] sm:$0xf]
    %v62 = vld [vmem:[#allocation2 + $0x8] sm:$0xf]
    %v63 = vld [vmem:[#allocation2 + $0xc] sm:$0xf]
    %v64 = vunpack.c.l.bf16 %v60
    %v65 = vunpack.c.l.bf16 %v61
    %v66 = vunpack.c.l.bf16 %v62
    %v67 = vunpack.c.l.bf16 %v63
    %v68 = vld [vmem:[%s3] sm:$0xff]
    %v69 = vld [vmem:[#allocation5] sm:$0xf]
    %v70 = vld [vmem:[#allocation5 + $0x4] sm:$0xf]
    %v71 = vld [vmem:[#allocation5 + $0x8] sm:$0xf]
    %v72 = vld [vmem:[#allocation5 + $0xc] sm:$0xf]
    %v73 = vld [vmem:[#allocation5 + $0x10] sm:$0xf]
    %v74 = vld [vmem:[#allocation5 + $0x14] sm:$0xf]
    %v75 = vld [vmem:[#allocation5 + $0x18] sm:$0xf]
    %v76 = vld [vmem:[#allocation5 + $0x1c] sm:$0xf]
    %v77 = vld [vmem:[#allocation5 + $0x20] sm:$0xf]
    %v78 = vld [vmem:[#allocation5 + $0x24] sm:$0xf]
    %v79 = vld [vmem:[#allocation5 + $0x28] sm:$0xf]
    %v80 = vld [vmem:[#allocation5 + $0x2c] sm:$0xf]
    %v81 = vld [vmem:[#allocation5 + $0x30] sm:$0xf]
    %v82 = vld [vmem:[#allocation5 + $0x34] sm:$0xf]
    %v83 = vld [vmem:[#allocation5 + $0x38] sm:$0xf]
    %v84 = vld [vmem:[#allocation5 + $0x3c] sm:$0xf]
    %v85 = vlaneseq
    %v86 = vshrl.u32 %v85, 7
    %v87 = vsub.s32 0, %v86
    %v88 = vrot.slane %v68, %v87
    %v93 = vunpack.c.l.b16 %v60
    %v94 = vunpack.c.l.b16 %v61
    %v95 = vunpack.c.l.b16 %v62
    %v96 = vunpack.c.l.b16 %v63
    %v97 = vpack.c.b16 %v94, %v93
    %v98 = vpack.c.b16 %v96, %v95
    %v117 = vunpack.c.l.b16 %v69
    %v118 = vunpack.c.l.b16 %v70
    %v119 = vunpack.c.l.b16 %v71
    %v120 = vunpack.c.l.b16 %v72
    %v121 = vunpack.c.l.b16 %v73
    %v122 = vunpack.c.l.b16 %v74
    %v123 = vunpack.c.l.b16 %v75
    %v124 = vunpack.c.l.b16 %v76
    %v125 = vunpack.c.l.b16 %v77
    %v126 = vunpack.c.l.b16 %v78
    %v127 = vunpack.c.l.b16 %v79
    %v128 = vunpack.c.l.b16 %v80
    %v129 = vunpack.c.l.b16 %v81
    %v130 = vunpack.c.l.b16 %v82
    %v131 = vunpack.c.l.b16 %v83
    %v132 = vunpack.c.l.b16 %v84
    %v133 = vpack.c.b16 %v118, %v117
    %v134 = vpack.c.b16 %v120, %v119
    %v135 = vpack.c.b16 %v122, %v121
    %v136 = vpack.c.b16 %v124, %v123
    %v137 = vpack.c.b16 %v126, %v125
    %v138 = vpack.c.b16 %v128, %v127
    %v139 = vpack.c.b16 %v130, %v129
    %v140 = vpack.c.b16 %v132, %v131
    %149 = vmatprep.subr.bf16.mxu0 0
    %150 = vmatpush1.bf16.msra.mxu0 %v133
    %151 = vmatprep.subr.bf16.mxu0 0
    %152 = vmatpush1.bf16.msra.mxu0 %v134
    %153 = vmatprep.subr.bf16.mxu0 0
    %154 = vmatpush1.bf16.msra.mxu0 %v135
    %155 = vmatprep.subr.bf16.mxu0 0
    %156 = vmatpush1.bf16.msra.mxu0 %v136
    %157 = vmatprep.subr.bf16.mxu0 0
    %158 = vmatpush1.bf16.msra.mxu0 %v137
    %159 = vmatprep.subr.bf16.mxu0 0
    %160 = vmatpush1.bf16.msra.mxu0 %v138
    %161 = vmatprep.subr.bf16.mxu0 0
    %162 = vmatpush1.bf16.msra.mxu0 %v139
    %163 = vmatprep.subr.bf16.mxu0 0
    %164 = vmatpush1.bf16.msra.mxu0 %v140
    %165 = vmatprep.subr.bf16.mxu0 0
    %166 = vmatpush1.bf16.msra.mxu0 0
    %167 = vmatprep.subr.bf16.mxu0 0
    %168 = vmatpush1.bf16.msra.mxu0 0
    %169 = vmatprep.subr.bf16.mxu0 0
    %170 = vmatpush1.bf16.msra.mxu0 0
    %171 = vmatprep.subr.bf16.mxu0 0
    %172 = vmatpush1.bf16.msra.mxu0 0
    %173 = vmatprep.subr.bf16.mxu0 0
    %174 = vmatpush1.bf16.msra.mxu0 0
    %175 = vmatprep.subr.bf16.mxu0 0
    %176 = vmatpush1.bf16.msra.mxu0 0
    %177 = vmatprep.subr.bf16.mxu0 0
    %178 = vmatpush1.bf16.msra.mxu0 0
    %179 = vmatprep.subr.bf16.mxu0 0
    %180 = vmatpush1.bf16.msra.mxu0 0
    %181 = vmatprep.mubr.bf16.mxu0 0
    %182 = vmatmul.mubr.bf16.gmra.mrb[0].mxu0 %v97
    %v183 = vpop.f32.mrb[0].mxu0
    %v184 = vadd.f32 %v88, %v183
    %v185 = vpop.f32.mrb[0].mxu0
    %v186 = vpop.f32.mrb[0].mxu0
    %v187 = vadd.f32 %v88, %v186
    %v188 = vpop.f32.mrb[0].mxu0
    %189 = vmatprep.mubr.bf16.mxu0 0
    %190 = vmatmul.mubr.bf16.gmra.mrb[0].mxu0 %v98
    %v191 = vpop.f32.mrb[0].mxu0
    %v192 = vadd.f32 %v88, %v191
    %v193 = vpop.f32.mrb[0].mxu0
    %v194 = vpop.f32.mrb[0].mxu0
    %v195 = vadd.f32 %v88, %v194
    %v196 = vpop.f32.mrb[0].mxu0
    %197 = vdwg.mxu0
    %198 = vadd.xlane.f32.xlu0 %v184
    %v199 = vpop.xlane.xlu0 %198
    %200 = vadd.xlane.f32.xlu0 %v187
    %v201 = vpop.xlane.xlu0 %200
    %202 = vadd.xlane.f32.xlu0 %v192
    %v203 = vpop.xlane.xlu0 %202
    %204 = vadd.xlane.f32.xlu0 %v195
    %v205 = vpop.xlane.xlu0 %204
    %v206 = vmul.f32 %v199, 0.0078125
    %v207 = vmul.f32 %v201, 0.0078125
    %v208 = vmul.f32 %v203, 0.0078125
    %v209 = vmul.f32 %v205, 0.0078125
    %v210 = vsub.f32 %v184, %v206
    %v211 = vsub.f32 %v187, %v207
    %v212 = vsub.f32 %v192, %v208
    %v213 = vsub.f32 %v195, %v209
    %v214 = vmul.f32 %v210, %v210
    %v215 = vmul.f32 %v211, %v211
    %v216 = vmul.f32 %v212, %v212
    %v217 = vmul.f32 %v213, %v213
    %218 = vadd.xlane.f32.xlu0 %v214
    %v219 = vpop.xlane.xlu0 %218
    %220 = vadd.xlane.f32.xlu0 %v215
    %v221 = vpop.xlane.xlu0 %220
    %222 = vadd.xlane.f32.xlu0 %v216
    %v223 = vpop.xlane.xlu0 %222
    %224 = vadd.xlane.f32.xlu0 %v217
    %v225 = vpop.xlane.xlu0 %224
    %v226 = vmul.f32 %v219, 0.0078125
    %v227 = vmul.f32 %v221, 0.0078125
    %v228 = vmul.f32 %v223, 0.0078125
    %v229 = vmul.f32 %v225, 0.0078125
    %v230 = vadd.f32 %v226, 1e-05
    %v231 = vadd.f32 %v227, 1e-05
    %v232 = vadd.f32 %v228, 1e-05
    %v233 = vadd.f32 %v229, 1e-05
    %v234 = vrsqrt.pop %v230
    %v235 = vrsqrt.pop %v231
    %v236 = vrsqrt.pop %v232
    %v237 = vrsqrt.pop %v233
    %v238 = vmul.f32 %v210, %v234
    %v239 = vmul.f32 %v211, %v235
    %v240 = vmul.f32 %v212, %v236
    %v241 = vmul.f32 %v213, %v237
    %v242 = vlaneseq
    %v243 = vshrl.u32 %v242, 7
    %v244 = vsub.s32 1, %v243
    %v245 = vrot.slane %v68, %v244
    %v246 = vmul.f32 %v238, %v245
    %v247 = vmul.f32 %v239, %v245
    %v248 = vmul.f32 %v240, %v245
    %v249 = vmul.f32 %v241, %v245
    %v250 = vlaneseq
    %v251 = vshrl.u32 %v250, 7
    %v252 = vsub.s32 2, %v251
    %v253 = vrot.slane %v68, %v252
    %v254 = vadd.f32 %v246, %v253
    %v255 = vadd.f32 %v247, %v253
    %v256 = vadd.f32 %v248, %v253
    %v257 = vadd.f32 %v249, %v253
    %v258 = vmax.f32 %v254, 0.0
    %v259 = vmax.f32 %v255, 0.0
    %v260 = vmax.f32 %v256, 0.0
    %v261 = vmax.f32 %v257, 0.0
    %v262 = vpack.c.bf16 %v259, %v258
    %v263 = vpack.c.bf16 %v261, %v260
    %v264 = vld [vmem:[#allocation7] sm:$0xf]
    %v265 = vld [vmem:[#allocation7 + $0x4] sm:$0xf]
    %v266 = vld [vmem:[#allocation7 + $0x8] sm:$0xf]
    %v267 = vld [vmem:[#allocation7 + $0xc] sm:$0xf]
    %v268 = vld [vmem:[#allocation7 + $0x10] sm:$0xf]
    %v269 = vld [vmem:[#allocation7 + $0x14] sm:$0xf]
    %v270 = vld [vmem:[#allocation7 + $0x18] sm:$0xf]
    %v271 = vld [vmem:[#allocation7 + $0x1c] sm:$0xf]
    %v272 = vld [vmem:[#allocation7 + $0x20] sm:$0xf]
    %v273 = vld [vmem:[#allocation7 + $0x24] sm:$0xf]
    %v274 = vld [vmem:[#allocation7 + $0x28] sm:$0xf]
    %v275 = vld [vmem:[#allocation7 + $0x2c] sm:$0xf]
    %v276 = vld [vmem:[#allocation7 + $0x30] sm:$0xf]
    %v277 = vld [vmem:[#allocation7 + $0x34] sm:$0xf]
    %v278 = vld [vmem:[#allocation7 + $0x38] sm:$0xf]
    %v279 = vld [vmem:[#allocation7 + $0x3c] sm:$0xf]
    %v280 = vlaneseq
    %v281 = vshrl.u32 %v280, 7
    %v282 = vsub.s32 3, %v281
    %v283 = vrot.slane %v68, %v282
    %v300 = vunpack.c.l.b16 %v264
    %v301 = vunpack.c.l.b16 %v265
    %v302 = vunpack.c.l.b16 %v266
    %v303 = vunpack.c.l.b16 %v267
    %v304 = vunpack.c.l.b16 %v268
    %v305 = vunpack.c.l.b16 %v269
    %v306 = vunpack.c.l.b16 %v270
    %v307 = vunpack.c.l.b16 %v271
    %v308 = vunpack.c.l.b16 %v272
    %v309 = vunpack.c.l.b16 %v273
    %v310 = vunpack.c.l.b16 %v274
    %v311 = vunpack.c.l.b16 %v275
    %v312 = vunpack.c.l.b16 %v276
    %v313 = vunpack.c.l.b16 %v277
    %v314 = vunpack.c.l.b16 %v278
    %v315 = vunpack.c.l.b16 %v279
    %v316 = vpack.c.b16 %v301, %v300
    %v317 = vpack.c.b16 %v303, %v302
    %v318 = vpack.c.b16 %v305, %v304
    %v319 = vpack.c.b16 %v307, %v306
    %v320 = vpack.c.b16 %v309, %v308
    %v321 = vpack.c.b16 %v311, %v310
    %v322 = vpack.c.b16 %v313, %v312
    %v323 = vpack.c.b16 %v315, %v314
    %332 = vmatprep.subr.bf16.mxu0 0
    %333 = vmatpush1.bf16.msra.mxu0 %v316
    %334 = vmatprep.subr.bf16.mxu0 0
    %335 = vmatpush1.bf16.msra.mxu0 %v317
    %336 = vmatprep.subr.bf16.mxu0 0
    %337 = vmatpush1.bf16.msra.mxu0 %v318
    %338 = vmatprep.subr.bf16.mxu0 0
    %339 = vmatpush1.bf16.msra.mxu0 %v319
    %340 = vmatprep.subr.bf16.mxu0 0
    %341 = vmatpush1.bf16.msra.mxu0 %v320
    %342 = vmatprep.subr.bf16.mxu0 0
    %343 = vmatpush1.bf16.msra.mxu0 %v321
    %344 = vmatprep.subr.bf16.mxu0 0
    %345 = vmatpush1.bf16.msra.mxu0 %v322
    %346 = vmatprep.subr.bf16.mxu0 0
    %347 = vmatpush1.bf16.msra.mxu0 %v323
    %348 = vmatprep.subr.bf16.mxu0 0
    %349 = vmatpush1.bf16.msra.mxu0 0
    %350 = vmatprep.subr.bf16.mxu0 0
    %351 = vmatpush1.bf16.msra.mxu0 0
    %352 = vmatprep.subr.bf16.mxu0 0
    %353 = vmatpush1.bf16.msra.mxu0 0
    %354 = vmatprep.subr.bf16.mxu0 0
    %355 = vmatpush1.bf16.msra.mxu0 0
    %356 = vmatprep.subr.bf16.mxu0 0
    %357 = vmatpush1.bf16.msra.mxu0 0
    %358 = vmatprep.subr.bf16.mxu0 0
    %359 = vmatpush1.bf16.msra.mxu0 0
    %360 = vmatprep.subr.bf16.mxu0 0
    %361 = vmatpush1.bf16.msra.mxu0 0
    %362 = vmatprep.subr.bf16.mxu0 0
    %363 = vmatpush1.bf16.msra.mxu0 0
    %364 = vmatprep.mubr.bf16.mxu0 0
    %365 = vmatmul.mubr.bf16.gmra.mrb[0].mxu0 %v262
    %v366 = vpop.f32.mrb[0].mxu0
    %v367 = vadd.f32 %v283, %v366
    %v368 = vpop.f32.mrb[0].mxu0
    %v369 = vpop.f32.mrb[0].mxu0
    %v370 = vadd.f32 %v283, %v369
    %v371 = vpop.f32.mrb[0].mxu0
    %372 = vmatprep.mubr.bf16.mxu0 0
    %373 = vmatmul.mubr.bf16.gmra.mrb[0].mxu0 %v263
    %v374 = vpop.f32.mrb[0].mxu0
    %v375 = vadd.f32 %v283, %v374
    %v376 = vpop.f32.mrb[0].mxu0
    %v377 = vpop.f32.mrb[0].mxu0
    %v378 = vadd.f32 %v283, %v377
    %v379 = vpop.f32.mrb[0].mxu0
    %380 = vdwg.mxu0
    %381 = vadd.xlane.f32.xlu0 %v367
    %v382 = vpop.xlane.xlu0 %381
    %383 = vadd.xlane.f32.xlu0 %v370
    %v384 = vpop.xlane.xlu0 %383
    %385 = vadd.xlane.f32.xlu0 %v375
    %v386 = vpop.xlane.xlu0 %385
    %387 = vadd.xlane.f32.xlu0 %v378
    %v388 = vpop.xlane.xlu0 %387
    %v389 = vmul.f32 %v382, 0.0078125
    %v390 = vmul.f32 %v384, 0.0078125
    %v391 = vmul.f32 %v386, 0.0078125
    %v392 = vmul.f32 %v388, 0.0078125
    %v393 = vsub.f32 %v367, %v389
    %v394 = vsub.f32 %v370, %v390
    %v395 = vsub.f32 %v375, %v391
    %v396 = vsub.f32 %v378, %v392
    %v397 = vmul.f32 %v393, %v393
    %v398 = vmul.f32 %v394, %v394
    %v399 = vmul.f32 %v395, %v395
    %v400 = vmul.f32 %v396, %v396
    %401 = vadd.xlane.f32.xlu0 %v397
    %v402 = vpop.xlane.xlu0 %401
    %403 = vadd.xlane.f32.xlu0 %v398
    %v404 = vpop.xlane.xlu0 %403
    %405 = vadd.xlane.f32.xlu0 %v399
    %v406 = vpop.xlane.xlu0 %405
    %407 = vadd.xlane.f32.xlu0 %v400
    %v408 = vpop.xlane.xlu0 %407
    %v409 = vmul.f32 %v402, 0.0078125
    %v410 = vmul.f32 %v404, 0.0078125
    %v411 = vmul.f32 %v406, 0.0078125
    %v412 = vmul.f32 %v408, 0.0078125
    %v413 = vadd.f32 %v409, 1e-05
    %v414 = vadd.f32 %v410, 1e-05
    %v415 = vadd.f32 %v411, 1e-05
    %v416 = vadd.f32 %v412, 1e-05
    %v417 = vrsqrt.pop %v413
    %v418 = vrsqrt.pop %v414
    %v419 = vrsqrt.pop %v415
    %v420 = vrsqrt.pop %v416
    %v421 = vmul.f32 %v393, %v417
    %v422 = vmul.f32 %v394, %v418
    %v423 = vmul.f32 %v395, %v419
    %v424 = vmul.f32 %v396, %v420
    %v425 = vlaneseq
    %v426 = vshrl.u32 %v425, 7
    %v427 = vsub.s32 4, %v426
    %v428 = vrot.slane %v68, %v427
    %v429 = vmul.f32 %v421, %v428
    %v430 = vmul.f32 %v422, %v428
    %v431 = vmul.f32 %v423, %v428
    %v432 = vmul.f32 %v424, %v428
    %v433 = vlaneseq
    %v434 = vshrl.u32 %v433, 7
    %v435 = vsub.s32 5, %v434
    %v436 = vrot.slane %v68, %v435
    %v437 = vadd.f32 %v429, %v436
    %v438 = vadd.f32 %v430, %v436
    %v439 = vadd.f32 %v431, %v436
    %v440 = vadd.f32 %v432, %v436
    %v441 = vadd.f32 %v64, %v437
    %v442 = vadd.f32 %v65, %v438
    %v443 = vadd.f32 %v66, %v439
    %v444 = vadd.f32 %v67, %v440
    %v445 = vmax.f32 %v441, 0.0
    %v446 = vmax.f32 %v442, 0.0
    %v447 = vmax.f32 %v443, 0.0
    %v448 = vmax.f32 %v444, 0.0
    %v449 = vpack.c.bf16 %v446, %v445
    %v450 = vpack.c.bf16 %v448, %v447
    %v453 = vunpack.c.l.b16 %v449
    %v454 = vunpack.c.h.b16 %v449
    %v455 = vunpack.c.l.b16 %v450
    %v456 = vunpack.c.h.b16 %v450
    %v457 = vpack.c.b16 %v453, %v453
    %v458 = vpack.c.b16 %v454, %v454
    %v459 = vpack.c.b16 %v455, %v455
    %v460 = vpack.c.b16 %v456, %v456
    %465 = vst [vmem:[#allocation8] sm:$0xf] %v457
    %466 = vst [vmem:[#allocation8 + $0x4] sm:$0xf] %v458
    %467 = vst [vmem:[#allocation8 + $0x8] sm:$0xf] %v459
    %468 = vst [vmem:[#allocation8 + $0xc] sm:$0xf] %v460
    // Predicated region
    $region30: #{tpu_custom_call.1} parent=1 // pred_check
      _
    $region31: #{tpu_custom_call.1} parent=1 // pred_check_branch
      %470 = sbr.rel (0) target = $region33
    $region32: #{tpu_custom_call.1} parent=1 // pred_region
      %s472 = ssub.s32 256, 256
      %473 = vsyncadd [#allocation4], %s472
      %s474 = sshll.u32 [#allocation8], 4
      %s475 = int_to_ptr.vmem [resolvable:$true] %s474
      %480 = dma.vmem_to_hbm [thread:$0]  %s475, 256, %s4, [#allocation4], 64, 64, 4
    $region33: #{tpu_custom_call.1} parent=1 // pred_fallthru
      _
    // Predicated region
    $region34: #{tpu_custom_call.1} parent=1 // pred_check
      _
    $region35: #{tpu_custom_call.1} parent=1 // pred_check_branch
      %482 = sbr.rel (0) target = $region37
    $region36: #{tpu_custom_call.1} parent=1 // pred_region
      %483 = dma.done [#allocation4], 256
    $region37: #{tpu_custom_call.1} parent=1 // pred_fallthru
      _
    %484 = vsyncpa [#allocation3], 1
    %485 = vsyncpa [#allocation6], 1
    %486 = vsyncpa [#allocation4], 1

</llo_original>
